<compile_context>
chip_gen: v5e
topology: v5e:2x2
jax: 0.10.0
libtpu: 0.0.40
codegen_flags: <defaults>
</compile_context>

<pallas_src>
import functools
import math

import jax
import jax.numpy as jnp
from jax import lax
from jax.experimental import pallas as pl
from jax.experimental.pallas import tpu as pltpu


def _round_up(a, b):
    return (a + b - 1) // b * b


def _elu(v):
    return jnp.where(v > 0, v, jnp.exp(v) - 1.0)


# --------------------------------------------------------------------------- #
# Projection + attention-score kernels (small, grid-free, all-VMEM)           #
# --------------------------------------------------------------------------- #
def _proj_scores_kernel(num_heads, x_ref, w_ref, aw_src_ref, aw_dst_ref,
                        z_ref, asrc_ref, adst_ref):
    """z[h] = x @ w[h]; a_src[h] = z[h] . att_src[h]; a_dst[h] = z[h] . att_dst[h]."""
    x = x_ref[...]                                    # [Np, Fin] f32
    aw_src = aw_src_ref[...]                          # [H, C]
    aw_dst = aw_dst_ref[...]                          # [H, C]
    for h in range(num_heads):
        zh = jnp.dot(x, w_ref[h], preferred_element_type=jnp.float32)   # [Np, C]
        # destination (target) score, column layout [Np, 1]
        adst_ref[h] = jnp.sum(zh * aw_dst[h:h + 1, :], axis=-1, keepdims=True)
        # source score, row layout [1, Np] (done once per layer, not per tile)
        asrc_ref[h] = lax.dot_general(aw_src[h:h + 1, :], zh,
                                      (((1,), (1,)), ((), ())),
                                      preferred_element_type=jnp.float32)
        # bf16 copy of z for the MXU aggregation (f32 accumulation downstream)
        z_ref[h] = zh.astype(jnp.bfloat16)


def _proj2_scores_kernel(num_heads, h1_ref, w_ref, aw_src_ref, aw_dst_ref,
                         z_ref, asrc_ref, adst_ref):
    """z = sum_h h1[h] @ w[h]  (== concat(h1) @ W2), plus single-head scores."""
    z = jnp.dot(h1_ref[0], w_ref[0], preferred_element_type=jnp.float32)
    for h in range(1, num_heads):
        z = z + jnp.dot(h1_ref[h], w_ref[h], preferred_element_type=jnp.float32)
    adst_ref[0] = jnp.sum(z * aw_dst_ref[...], axis=-1, keepdims=True)   # [Np, 1]
    asrc_ref[0] = lax.dot_general(aw_src_ref[...], z,
                                  (((1,), (1,)), ((), ())),
                                  preferred_element_type=jnp.float32)    # [1, Np]
    z_ref[0] = z.astype(jnp.bfloat16)


# --------------------------------------------------------------------------- #
# Row-tiled GAT attention kernel (the O(N^2) hot path)                        #
# --------------------------------------------------------------------------- #
def _gat_attn_kernel(num_heads, concat, apply_elu,
                     z_ref, asrc_ref, adst_ref, adj_ref, b_ref, out_ref):
    # z_ref:    [H, Np, C]  bf16 (full, resident)
    # asrc_ref: [H, 1, Np]  f32  (full, resident)
    # adst_ref: [H, TQ, 1]  f32  (row tile)
    # adj_ref:  [TQ, Np]    int8 (row tile)
    # b_ref:    [H_out, C]  f32
    # out_ref:  [H_out, TQ, C] f32 (row tile)
    adj = adj_ref[...] != 0
    neg_big = jnp.float32(-1e30)
    bias = b_ref[...]
    acc = None
    for h in range(num_heads):
        zh = z_ref[h]                                          # [Np, C] bf16
        a_src = asrc_ref[h]                                    # [1, Np]
        a_dst = adst_ref[h]                                    # [TQ, 1]
        e = a_dst + a_src                                      # [TQ, Np]
        e = jnp.where(e > 0, e, 0.2 * e)                       # LeakyReLU(0.2)
        e = jnp.where(adj, e, neg_big)                         # mask (f32)
        m = jnp.max(e, axis=-1, keepdims=True)
        p = jnp.exp(e - m)                                     # masked -> exp underflows to 0
        inv = pl.reciprocal(jnp.sum(p, axis=-1, keepdims=True), approx=True)
        attn = (p * inv).astype(jnp.bfloat16)                  # [TQ, Np] bf16
        out_h = jnp.dot(attn, zh, preferred_element_type=jnp.float32)   # [TQ, C] f32
        if concat:
            v = out_h + bias[h:h + 1, :]
            if apply_elu:
                v = _elu(v)
            out_ref[h] = v
        else:
            acc = out_h if acc is None else acc + out_h
    if not concat:
        v = acc * (1.0 / float(num_heads)) + bias[0:1, :]
        if apply_elu:
            v = _elu(v)
        out_ref[0] = v


def _gat_attention(z, asrc, adst, adj, bias, *, num_heads, concat, apply_elu,
                   tq, grid):
    h_out = num_heads if concat else 1
    np_pad, c = z.shape[1], z.shape[2]
    kernel = functools.partial(_gat_attn_kernel, num_heads, concat, apply_elu)
    # NOTE: output last dim (C) is lane-narrow at toy sizes; pad C to 128 in the
    # wrapper if hidden/out channels grow (masked vst cost at scale).
    return pl.pallas_call(
        kernel,
        out_shape=jax.ShapeDtypeStruct((h_out, np_pad, c), jnp.float32),
        grid=(grid,),
        in_specs=[
            pl.BlockSpec((num_heads, np_pad, c), lambda i: (0, 0, 0)),   # z (full)
            pl.BlockSpec((num_heads, 1, np_pad), lambda i: (0, 0, 0)),   # a_src (full)
            pl.BlockSpec((num_heads, tq, 1), lambda i: (0, i, 0)),       # a_dst (tile)
            pl.BlockSpec((tq, np_pad), lambda i: (i, 0)),                # adj (int8 tile)
            pl.BlockSpec((h_out, c), lambda i: (0, 0)),                  # bias
        ],
        out_specs=pl.BlockSpec((h_out, tq, c), lambda i: (0, i, 0)),
        compiler_params=pltpu.CompilerParams(
            dimension_semantics=("parallel",),
            vmem_limit_bytes=48 * 1024 * 1024),
        cost_estimate=pl.CostEstimate(
            flops=int(2 * num_heads * np_pad * np_pad * c
                      + 6 * num_heads * np_pad * np_pad),
            transcendentals=int(num_heads * np_pad * np_pad),
            bytes_accessed=int(np_pad * np_pad                       # int8 adj
                               + 2 * num_heads * np_pad * c          # bf16 z
                               + 4 * (h_out * np_pad * c + 2 * num_heads * np_pad))),
    )(z, asrc, adst, adj, bias)


# --------------------------------------------------------------------------- #
# global_mean_pool as a pooling matmul                                        #
# --------------------------------------------------------------------------- #
def _pool_kernel(pool_ref, h2_ref, out_ref):
    out_ref[...] = jnp.dot(pool_ref[...], h2_ref[0],
                           preferred_element_type=jnp.float32)


# --------------------------------------------------------------------------- #
# Wrapper                                                                     #
# --------------------------------------------------------------------------- #
def gat_encoder_forward(x, edge_index, batch, params, num_graphs, *, tq=128):
    n, f_in = x.shape
    num_heads, _, c1 = params["w1"].shape
    c2 = params["w2"].shape[-1]

    # Row-tile size: multiple of 32 (int8 sublane packing); pad N so the lane
    # dim is 128-aligned and divisible by the tile.
    tq = max(32, 32 * (int(tq) // 32))
    np_pad = _round_up(n, math.lcm(tq, 128))
    grid = np_pad // tq

    # Glue: densify edge_index (source -> target) into an int8 mask + self loops
    # (matches PyG add_self_loops=True), build the [G, Np] mean-pool matrix.
    x_pad = jnp.zeros((np_pad, f_in), jnp.float32).at[:n, :].set(x.astype(jnp.float32))
    src, dst = edge_index[0], edge_index[1]
    adj = jnp.zeros((np_pad, np_pad), jnp.int8).at[dst, src].set(1)
    adj = jnp.maximum(adj, jnp.eye(np_pad, dtype=jnp.int8))

    batch_pad = jnp.concatenate(
        [batch.astype(jnp.int32), jnp.full((np_pad - n,), -1, jnp.int32)])
    onehot = (batch_pad[None, :] ==
              jnp.arange(num_graphs, dtype=jnp.int32)[:, None]).astype(jnp.float32)
    pool = onehot / jnp.maximum(jnp.sum(onehot, axis=1, keepdims=True), 1.0)

    vmem = pl.BlockSpec(memory_space=pltpu.MemorySpace.VMEM)

    # ---- layer 1: per-head projection + score vectors ----
    z1, asrc1, adst1 = pl.pallas_call(
        functools.partial(_proj_scores_kernel, num_heads),
        out_shape=(jax.ShapeDtypeStruct((num_heads, np_pad, c1), jnp.bfloat16),
                   jax.ShapeDtypeStruct((num_heads, 1, np_pad), jnp.float32),
                   jax.ShapeDtypeStruct((num_heads, np_pad, 1), jnp.float32)),
        in_specs=[vmem] * 4,
        out_specs=(vmem, vmem, vmem),
    )(x_pad, params["w1"], params["att_src1"], params["att_dst1"])

    # ---- layer 1: row-tiled attention + bias + ELU (concat heads kept as [H,N,C]) ----
    h1 = _gat_attention(z1, asrc1, adst1, adj, params["b1"],
                        num_heads=num_heads, concat=True, apply_elu=True,
                        tq=tq, grid=grid)

    # ---- layer 2: projection (sum over heads) + score vectors ----
    z2, asrc2, adst2 = pl.pallas_call(
        functools.partial(_proj2_scores_kernel, num_heads),
        out_shape=(jax.ShapeDtypeStruct((1, np_pad, c2), jnp.bfloat16),
                   jax.ShapeDtypeStruct((1, 1, np_pad), jnp.float32),
                   jax.ShapeDtypeStruct((1, np_pad, 1), jnp.float32)),
        in_specs=[vmem] * 4,
        out_specs=(vmem, vmem, vmem),
    )(h1, params["w2"], params["att_src2"], params["att_dst2"])

    # ---- layer 2: row-tiled attention (single head, no concat, no ELU) ----
    h2 = _gat_attention(z2, asrc2, adst2, adj, params["b2"],
                        num_heads=1, concat=False, apply_elu=False,
                        tq=tq, grid=grid)

    # ---- global_mean_pool: [G, Np] @ [Np, C2] ----
    out = pl.pallas_call(
        _pool_kernel,
        out_shape=jax.ShapeDtypeStruct((num_graphs, c2), jnp.float32),
        in_specs=[vmem, vmem],
        out_specs=vmem,
    )(pool, h2)
    return out


# --------------------------------------------------------------------------- #
# Params + pure-JAX reference                                                 #
# --------------------------------------------------------------------------- #
def init_params(key, in_channels, hidden_channels, out_channels, num_heads):
    ks = jax.random.split(key, 6)

    def glorot(k, shape, fan_in, fan_out):
        limit = jnp.sqrt(6.0 / (fan_in + fan_out))
        return jax.random.uniform(k, shape, jnp.float32, -limit, limit)

    h = hidden_channels
    return {
        "w1": glorot(ks[0], (num_heads, in_channels, h), in_channels, num_heads * h),
        "att_src1": glorot(ks[1], (num_heads, h), h, h),
        "att_dst1": glorot(ks[2], (num_heads, h), h, h),
        "b1": jnp.zeros((num_heads, h), jnp.float32),
        "w2": glorot(ks[3], (num_heads, h, out_channels), num_heads * h, out_channels),
        "att_src2": glorot(ks[4], (1, out_channels), out_channels, out_channels),
        "att_dst2": glorot(ks[5], (1, out_channels), out_channels, out_channels),
        "b2": jnp.zeros((1, out_channels), jnp.float32),
    }


def reference_forward(x, edge_index, batch, params, num_graphs):
    """Pure-JAX f32 dense reference of the same semantics (for validation)."""
    n = x.shape[0]
    num_heads = params["w1"].shape[0]
    src, dst = edge_index[0], edge_index[1]
    adj = jnp.zeros((n, n), jnp.float32).at[dst, src].set(1.0)
    adj = jnp.maximum(adj, jnp.eye(n, dtype=jnp.float32))
    mask = adj > 0

    def attn_head(zh, a_s, a_d):
        e = (zh @ a_d)[:, None] + (zh @ a_s)[None, :]
        e = jnp.where(e > 0, e, 0.2 * e)
        e = jnp.where(mask, e, -1e30)
        p = jnp.where(mask, jnp.exp(e - e.max(-1, keepdims=True)), 0.0)
        return (p / p.sum(-1, keepdims=True)) @ zh

    h1 = []
    for h in range(num_heads):
        zh = x @ params["w1"][h]
        o = attn_head(zh, params["att_src1"][h], params["att_dst1"][h]) + params["b1"][h]
        h1.append(jnp.where(o > 0, o, jnp.exp(o) - 1.0))     # F.elu

    z2 = sum(h1[h] @ params["w2"][h] for h in range(num_heads))
    h2 = attn_head(z2, params["att_src2"][0], params["att_dst2"][0]) + params["b2"][0]

    onehot = (batch[None, :] == jnp.arange(num_graphs)[:, None]).astype(jnp.float32)
    pool = onehot / jnp.maximum(onehot.sum(1, keepdims=True), 1.0)
    return pool @ h2


if __name__ == "__main__":
    in_channels, hidden_channels, out_channels, num_heads = 8, 8, 8, 2
    n_per_graph, num_graphs = 8, 2
    n = n_per_graph * num_graphs

    key = jax.random.PRNGKey(0)
    kx, ke1, ke2, kp = jax.random.split(key, 4)

    x = jax.random.normal(kx, (n, in_channels), jnp.float32)

    e_per_graph = 20
    src0 = jax.random.randint(ke1, (e_per_graph,), 0, n_per_graph)
    dst0 = jax.random.randint(ke2, (e_per_graph,), 0, n_per_graph)
    src = jnp.concatenate([src0, src0 + n_per_graph]).astype(jnp.int32)
    dst = jnp.concatenate([dst0, dst0 + n_per_graph]).astype(jnp.int32)
    edge_index = jnp.stack([src, dst])                     # [2, E]: row0=source, row1=target

    batch = jnp.concatenate([jnp.zeros(n_per_graph, jnp.int32),
                             jnp.ones(n_per_graph, jnp.int32)])

    params = init_params(kp, in_channels, hidden_channels, out_channels, num_heads)

    # tq=32 -> nodes padded to 128, grid=(4,): exercises the row-tiled pipeline.
    out = gat_encoder_forward(x, edge_index, batch, params, num_graphs, tq=32)
    out = jax.block_until_ready(out)

    ref = reference_forward(x, edge_index, batch, params, num_graphs)
    assert out.shape == (num_graphs, out_channels)
    # bf16 MXU operands + approx reciprocal => compare with a modest tolerance.
    assert bool(jnp.allclose(out, ref, atol=5e-2, rtol=5e-2))
    print("KERNEL_OK")
</pallas_src>

<mosaic_0001>
module attributes {stable_mosaic.version = 11 : i64} {
  func.func @_proj_scores_kernel(%arg0: memref<128x8xf32, #tpu.memory_space<vmem>>, %arg1: memref<2x8x8xf32, #tpu.memory_space<vmem>>, %arg2: memref<2x8xf32, #tpu.memory_space<vmem>>, %arg3: memref<2x8xf32, #tpu.memory_space<vmem>>, %arg4: memref<2x128x8xbf16, #tpu.memory_space<vmem>>, %arg5: memref<2x1x128xf32, #tpu.memory_space<vmem>>, %arg6: memref<2x128x1xf32, #tpu.memory_space<vmem>>) attributes {dimension_semantics = [], scalar_prefetch = 0 : i64, scratch_operands = 0 : i64, tpu.core_type = #tpu.core_type<tc>} {
    %c0 = arith.constant 0 : index
    %c0_0 = arith.constant 0 : index
    %0 = vector.load %arg0[%c0, %c0_0] : memref<128x8xf32, #tpu.memory_space<vmem>>, vector<128x8xf32>
    %c0_1 = arith.constant 0 : index
    %c0_2 = arith.constant 0 : index
    %1 = vector.load %arg2[%c0_1, %c0_2] : memref<2x8xf32, #tpu.memory_space<vmem>>, vector<2x8xf32>
    %c0_3 = arith.constant 0 : index
    %c0_4 = arith.constant 0 : index
    %2 = vector.load %arg3[%c0_3, %c0_4] : memref<2x8xf32, #tpu.memory_space<vmem>>, vector<2x8xf32>
    %c0_5 = arith.constant 0 : index
    %c0_6 = arith.constant 0 : index
    %c0_7 = arith.constant 0 : index
    %3 = vector.load %arg1[%c0_5, %c0_6, %c0_7] : memref<2x8x8xf32, #tpu.memory_space<vmem>>, vector<1x8x8xf32>
    %4 = vector.shape_cast %3 : vector<1x8x8xf32> to vector<8x8xf32>
    %cst = arith.constant dense<0.000000e+00> : vector<128x8xf32>
    %5 = tpu.matmul %0, %4, %cst {dimension_numbers = #tpu.dot_dimension_numbers<[1], [0], [0], [1], [0, 0, 1, 1], [], []>} : vector<128x8xf32>, vector<8x8xf32>, vector<128x8xf32> -> vector<128x8xf32>
    %6 = vector.extract_strided_slice %2 {offsets = [0, 0], sizes = [1, 8], strides = [1, 1]} : vector<2x8xf32> to vector<1x8xf32>
    %7 = vector.broadcast %6 : vector<1x8xf32> to vector<128x8xf32>
    %8 = arith.mulf %5, %7 : vector<128x8xf32>
    %cst_8 = arith.constant dense<0.000000e+00> : vector<128xf32>
    %9 = vector.multi_reduction <add>, %8, %cst_8 [1] : vector<128x8xf32> to vector<128xf32>
    %10 = vector.shape_cast %9 : vector<128xf32> to vector<128x1xf32>
    %c0_9 = arith.constant 0 : index
    %c0_10 = arith.constant 0 : index
    %c0_11 = arith.constant 0 : index
    %11 = vector.load %arg6[%c0_9, %c0_10, %c0_11] : memref<2x128x1xf32, #tpu.memory_space<vmem>>, vector<1x128x1xf32>
    %12 = vector.shape_cast %11 : vector<1x128x1xf32> to vector<128x1xf32>
    %13 = vector.shape_cast %10 : vector<128x1xf32> to vector<1x128x1xf32>
    tpu.vector_store %arg6[%c0_9, %c0_10, %c0_11], %13 {strides = array<i32>} : memref<2x128x1xf32, #tpu.memory_space<vmem>>, vector<1x128x1xf32>,
    %14 = vector.extract_strided_slice %1 {offsets = [0, 0], sizes = [1, 8], strides = [1, 1]} : vector<2x8xf32> to vector<1x8xf32>
    %cst_12 = arith.constant dense<0.000000e+00> : vector<1x128xf32>
    %15 = tpu.matmul %14, %5, %cst_12 {dimension_numbers = #tpu.dot_dimension_numbers<[1], [1], [0], [0], [0, 0, 1, 0], [], []>} : vector<1x8xf32>, vector<128x8xf32>, vector<1x128xf32> -> vector<1x128xf32>
    %c0_13 = arith.constant 0 : index
    %c0_14 = arith.constant 0 : index
    %c0_15 = arith.constant 0 : index
    %16 = vector.load %arg5[%c0_13, %c0_14, %c0_15] : memref<2x1x128xf32, #tpu.memory_space<vmem>>, vector<1x1x128xf32>
    %17 = vector.shape_cast %16 : vector<1x1x128xf32> to vector<1x128xf32>
    %18 = vector.shape_cast %15 : vector<1x128xf32> to vector<1x1x128xf32>
    tpu.vector_store %arg5[%c0_13, %c0_14, %c0_15], %18 {strides = array<i32>} : memref<2x1x128xf32, #tpu.memory_space<vmem>>, vector<1x1x128xf32>,
    %19 = arith.truncf %5 : vector<128x8xf32> to vector<128x8xbf16>
    %c0_16 = arith.constant 0 : index
    %c0_17 = arith.constant 0 : index
    %c0_18 = arith.constant 0 : index
    %20 = vector.load %arg4[%c0_16, %c0_17, %c0_18] : memref<2x128x8xbf16, #tpu.memory_space<vmem>>, vector<1x128x8xbf16>
    %21 = vector.shape_cast %20 : vector<1x128x8xbf16> to vector<128x8xbf16>
    %22 = vector.shape_cast %19 : vector<128x8xbf16> to vector<1x128x8xbf16>
    tpu.vector_store %arg4[%c0_16, %c0_17, %c0_18], %22 {strides = array<i32>} : memref<2x128x8xbf16, #tpu.memory_space<vmem>>, vector<1x128x8xbf16>,
    %c1 = arith.constant 1 : index
    %c0_19 = arith.constant 0 : index
    %c0_20 = arith.constant 0 : index
    %23 = vector.load %arg1[%c1, %c0_19, %c0_20] : memref<2x8x8xf32, #tpu.memory_space<vmem>>, vector<1x8x8xf32>
    %24 = vector.shape_cast %23 : vector<1x8x8xf32> to vector<8x8xf32>
    %cst_21 = arith.constant dense<0.000000e+00> : vector<128x8xf32>
    %25 = tpu.matmul %0, %24, %cst_21 {dimension_numbers = #tpu.dot_dimension_numbers<[1], [0], [0], [1], [0, 0, 1, 1], [], []>} : vector<128x8xf32>, vector<8x8xf32>, vector<128x8xf32> -> vector<128x8xf32>
    %26 = vector.extract_strided_slice %2 {offsets = [1, 0], sizes = [1, 8], strides = [1, 1]} : vector<2x8xf32> to vector<1x8xf32>
    %27 = vector.broadcast %26 : vector<1x8xf32> to vector<128x8xf32>
    %28 = arith.mulf %25, %27 : vector<128x8xf32>
    %cst_22 = arith.constant dense<0.000000e+00> : vector<128xf32>
    %29 = vector.multi_reduction <add>, %28, %cst_22 [1] : vector<128x8xf32> to vector<128xf32>
    %30 = vector.shape_cast %29 : vector<128xf32> to vector<128x1xf32>
    %c1_23 = arith.constant 1 : index
    %c0_24 = arith.constant 0 : index
    %c0_25 = arith.constant 0 : index
    %31 = vector.load %arg6[%c1_23, %c0_24, %c0_25] : memref<2x128x1xf32, #tpu.memory_space<vmem>>, vector<1x128x1xf32>
    %32 = vector.shape_cast %31 : vector<1x128x1xf32> to vector<128x1xf32>
    %33 = vector.shape_cast %30 : vector<128x1xf32> to vector<1x128x1xf32>
    tpu.vector_store %arg6[%c1_23, %c0_24, %c0_25], %33 {strides = array<i32>} : memref<2x128x1xf32, #tpu.memory_space<vmem>>, vector<1x128x1xf32>,
    %34 = vector.extract_strided_slice %1 {offsets = [1, 0], sizes = [1, 8], strides = [1, 1]} : vector<2x8xf32> to vector<1x8xf32>
    %cst_26 = arith.constant dense<0.000000e+00> : vector<1x128xf32>
    %35 = tpu.matmul %34, %25, %cst_26 {dimension_numbers = #tpu.dot_dimension_numbers<[1], [1], [0], [0], [0, 0, 1, 0], [], []>} : vector<1x8xf32>, vector<128x8xf32>, vector<1x128xf32> -> vector<1x128xf32>
    %c1_27 = arith.constant 1 : index
    %c0_28 = arith.constant 0 : index
    %c0_29 = arith.constant 0 : index
    %36 = vector.load %arg5[%c1_27, %c0_28, %c0_29] : memref<2x1x128xf32, #tpu.memory_space<vmem>>, vector<1x1x128xf32>
    %37 = vector.shape_cast %36 : vector<1x1x128xf32> to vector<1x128xf32>
    %38 = vector.shape_cast %35 : vector<1x128xf32> to vector<1x1x128xf32>
    tpu.vector_store %arg5[%c1_27, %c0_28, %c0_29], %38 {strides = array<i32>} : memref<2x1x128xf32, #tpu.memory_space<vmem>>, vector<1x1x128xf32>,
    %39 = arith.truncf %25 : vector<128x8xf32> to vector<128x8xbf16>
    %c1_30 = arith.constant 1 : index
    %c0_31 = arith.constant 0 : index
    %c0_32 = arith.constant 0 : index
    %40 = vector.load %arg4[%c1_30, %c0_31, %c0_32] : memref<2x128x8xbf16, #tpu.memory_space<vmem>>, vector<1x128x8xbf16>
    %41 = vector.shape_cast %40 : vector<1x128x8xbf16> to vector<128x8xbf16>
    %42 = vector.shape_cast %39 : vector<128x8xbf16> to vector<1x128x8xbf16>
    tpu.vector_store %arg4[%c1_30, %c0_31, %c0_32], %42 {strides = array<i32>} : memref<2x128x8xbf16, #tpu.memory_space<vmem>>, vector<1x128x8xbf16>,
    return
  }
}

</mosaic_0001>

<llo_original>
// kernel: tpu_custom_call.1
$region0: #{tpu_custom_call.1}
  #allocation0 [shape = 'u32[]', space=smem, size = 0x4, offset = 0x4, fixed_abs, tag = 'smem constant byte address 0x4 - core index']
  #allocation1 [shape = 'u32[72,128]{1,0:T(1,128)}', space=vmem, size = 0x9000, scoped, tag = 'internal scratch']
  %s0 = inlined_call_operand.vmem [shape: f32[128,8], index: 0, kind: input, shape index: {}]
  %s1 = inlined_call_operand.vmem [shape: f32[2,8,8], index: 1, kind: input, shape index: {}]
  %s2 = inlined_call_operand.vmem [shape: f32[2,8], index: 2, kind: input, shape index: {}]
  %s3 = inlined_call_operand.vmem [shape: f32[2,8], index: 3, kind: input, shape index: {}]
  %s4 = inlined_call_operand.vmem [shape: bf16[2,128,8], index: 4, kind: output, shape index: {0}]
  %s5 = inlined_call_operand.hbm [shape: f32[2,1,128], index: 5, kind: output, shape index: {1}]
  %s6 = inlined_call_operand.vmem [shape: f32[2,128,1], index: 6, kind: output, shape index: {2}]
  %7 = xla_tuple %s4, %s5, %s6
  %s8 = sld [smem:[#allocation0]]
  $region42: #{tpu_custom_call.1} parent=0
    _
  %s10 = ssub.s32 1, %s8
  %s11 = scalar_select 0, %s10, %s8
  $region1: #{tpu_custom_call.1} parent=0
    #allocation2 [shape = 'u8[1024]{0}', space=vmem, size = 0x400, scoped, tag = 'output window, operand 1, single buffered']
    #allocation3 [shape = 's32[1]{0}', space=sflag, size = 0x4, scoped, tag = 'scoped memory for tpu_custom_call.1']
    %12 = vsyncpa [#allocation3], 0
    // Predicated region
    $region2: #{tpu_custom_call.1} parent=1 // pred_check
      _
    $region3: #{tpu_custom_call.1} parent=1 // pred_check_branch
      %14 = sbr.rel (0) target = $region5
    $region4: #{tpu_custom_call.1} parent=1 // pred_region
      _
    $region5: #{tpu_custom_call.1} parent=1 // pred_fallthru
      _
    // Predicated region
    $region6: #{tpu_custom_call.1} parent=1 // pred_check
      _
    $region7: #{tpu_custom_call.1} parent=1 // pred_check_branch
      %16 = sbr.rel (0) target = $region9
    $region8: #{tpu_custom_call.1} parent=1 // pred_region
      _
    $region9: #{tpu_custom_call.1} parent=1 // pred_fallthru
      _
    // Predicated region
    $region10: #{tpu_custom_call.1} parent=1 // pred_check
      _
    $region11: #{tpu_custom_call.1} parent=1 // pred_check_branch
      %18 = sbr.rel (0) target = $region13
    $region12: #{tpu_custom_call.1} parent=1 // pred_region
      _
    $region13: #{tpu_custom_call.1} parent=1 // pred_fallthru
      _
    // Predicated region
    $region14: #{tpu_custom_call.1} parent=1 // pred_check
      _
    $region15: #{tpu_custom_call.1} parent=1 // pred_check_branch
      %20 = sbr.rel (0) target = $region17
    $region16: #{tpu_custom_call.1} parent=1 // pred_region
      _
    $region17: #{tpu_custom_call.1} parent=1 // pred_fallthru
      _
    %v21 = vld [vmem:[%s0] sm:$0xff]
    %v22 = vld [vmem:[%s0 + $0x8] sm:$0xff]
    %v23 = vld [vmem:[%s0 + $0x10] sm:$0xff]
    %v24 = vld [vmem:[%s0 + $0x18] sm:$0xff]
    %v25 = vld [vmem:[%s0 + $0x20] sm:$0xff]
    %v26 = vld [vmem:[%s0 + $0x28] sm:$0xff]
    %v27 = vld [vmem:[%s0 + $0x30] sm:$0xff]
    %v28 = vld [vmem:[%s0 + $0x38] sm:$0xff]
    %v29 = vld [vmem:[%s0 + $0x40] sm:$0xff]
    %v30 = vld [vmem:[%s0 + $0x48] sm:$0xff]
    %v31 = vld [vmem:[%s0 + $0x50] sm:$0xff]
    %v32 = vld [vmem:[%s0 + $0x58] sm:$0xff]
    %v33 = vld [vmem:[%s0 + $0x60] sm:$0xff]
    %v34 = vld [vmem:[%s0 + $0x68] sm:$0xff]
    %v35 = vld [vmem:[%s0 + $0x70] sm:$0xff]
    %v36 = vld [vmem:[%s0 + $0x78] sm:$0xff]
    %v37 = vld [vmem:[%s2] sm:$0x3]
    %v38 = vld [vmem:[%s3] sm:$0x3]
    %v39 = vld [vmem:[%s1] sm:$0xff]
    %vm40 = vcmask 64512
    %v42 = vsel %vm40, %v21, 0
    %v45 = vsel %vm40, %v22, 0
    %v48 = vsel %vm40, %v23, 0
    %v51 = vsel %vm40, %v24, 0
    %v54 = vsel %vm40, %v25, 0
    %v57 = vsel %vm40, %v26, 0
    %v60 = vsel %vm40, %v27, 0
    %v63 = vsel %vm40, %v28, 0
    %v66 = vsel %vm40, %v29, 0
    %v69 = vsel %vm40, %v30, 0
    %v72 = vsel %vm40, %v31, 0
    %v75 = vsel %vm40, %v32, 0
    %v78 = vsel %vm40, %v33, 0
    %v81 = vsel %vm40, %v34, 0
    %v84 = vsel %vm40, %v35, 0
    %v87 = vsel %vm40, %v36, 0
    %89 = vmatpush.msra.mxu0 0.0
    %90 = vmatpush.msra.mxu0 0.0
    %91 = vmatpush.msra.mxu0 0.0
    %92 = vmatpush.msra.mxu0 0.0
    %93 = vmatpush.msra.mxu0 0.0
    %94 = vmatpush.msra.mxu0 0.0
    %95 = vmatpush.msra.mxu0 0.0
    %96 = vmatpush.msra.mxu0 0.0
    %97 = vmatpush.msra.mxu0 0.0
    %98 = vmatpush.msra.mxu0 0.0
    %99 = vmatpush.msra.mxu0 0.0
    %100 = vmatpush.msra.mxu0 0.0
    %101 = vmatpush.msra.mxu0 0.0
    %102 = vmatpush.msra.mxu0 0.0
    %103 = vmatpush.msra.mxu0 0.0
    %104 = vmatpush.msra.mxu0 %v39
    %105 = vmatmul.f32.gmra.mxu0 %v42
    %v106 = vpop.f32.mrf.mxu0
    %v107 = vadd.f32 0.0, %v106
    %108 = vmatmul.f32.gmra.mxu0 %v45
    %v109 = vpop.f32.mrf.mxu0
    %v110 = vadd.f32 0.0, %v109
    %111 = vmatmul.f32.gmra.mxu0 %v48
    %v112 = vpop.f32.mrf.mxu0
    %v113 = vadd.f32 0.0, %v112
    %114 = vmatmul.f32.gmra.mxu0 %v51
    %v115 = vpop.f32.mrf.mxu0
    %v116 = vadd.f32 0.0, %v115
    %117 = vmatmul.f32.gmra.mxu0 %v54
    %v118 = vpop.f32.mrf.mxu0
    %v119 = vadd.f32 0.0, %v118
    %120 = vmatmul.f32.gmra.mxu0 %v57
    %v121 = vpop.f32.mrf.mxu0
    %v122 = vadd.f32 0.0, %v121
    %123 = vmatmul.f32.gmra.mxu0 %v60
    %v124 = vpop.f32.mrf.mxu0
    %v125 = vadd.f32 0.0, %v124
    %126 = vmatmul.f32.gmra.mxu0 %v63
    %v127 = vpop.f32.mrf.mxu0
    %v128 = vadd.f32 0.0, %v127
    %129 = vmatmul.f32.gmra.mxu0 %v66
    %v130 = vpop.f32.mrf.mxu0
    %v131 = vadd.f32 0.0, %v130
    %132 = vmatmul.f32.gmra.mxu0 %v69
    %v133 = vpop.f32.mrf.mxu0
    %v134 = vadd.f32 0.0, %v133
    %135 = vmatmul.f32.gmra.mxu0 %v72
    %v136 = vpop.f32.mrf.mxu0
    %v137 = vadd.f32 0.0, %v136
    %138 = vmatmul.f32.gmra.mxu0 %v75
    %v139 = vpop.f32.mrf.mxu0
    %v140 = vadd.f32 0.0, %v139
    %141 = vmatmul.f32.gmra.mxu0 %v78
    %v142 = vpop.f32.mrf.mxu0
    %v143 = vadd.f32 0.0, %v142
    %144 = vmatmul.f32.gmra.mxu0 %v81
    %v145 = vpop.f32.mrf.mxu0
    %v146 = vadd.f32 0.0, %v145
    %147 = vmatmul.f32.gmra.mxu0 %v84
    %v148 = vpop.f32.mrf.mxu0
    %v149 = vadd.f32 0.0, %v148
    %150 = vmatmul.f32.gmra.mxu0 %v87
    %v151 = vpop.f32.mrf.mxu0
    %v152 = vadd.f32 0.0, %v151
    %153 = vdwg.mxu0
    %v154 = vperm.slane %v38, 0
    %v155 = vmul.f32 %v107, %v154
    %v156 = vmul.f32 %v110, %v154
    %v157 = vmul.f32 %v113, %v154
    %v158 = vmul.f32 %v116, %v154
    %v159 = vmul.f32 %v119, %v154
    %v160 = vmul.f32 %v122, %v154
    %v161 = vmul.f32 %v125, %v154
    %v162 = vmul.f32 %v128, %v154
    %v163 = vmul.f32 %v131, %v154
    %v164 = vmul.f32 %v134, %v154
    %v165 = vmul.f32 %v137, %v154
    %v166 = vmul.f32 %v140, %v154
    %v167 = vmul.f32 %v143, %v154
    %v168 = vmul.f32 %v146, %v154
    %v169 = vmul.f32 %v149, %v154
    %v170 = vmul.f32 %v152, %v154
    %v171 = vsel %vm40, %v155, 0.0
    %172 = vadd.xlane.f32.xlu0 %v171
    %v173 = vpop.xlane.xlu0 %172
    %v174 = vsel %vm40, %v156, 0.0
    %175 = vadd.xlane.f32.xlu0 %v174
    %v176 = vpop.xlane.xlu0 %175
    %v177 = vsel %vm40, %v157, 0.0
    %178 = vadd.xlane.f32.xlu0 %v177
    %v179 = vpop.xlane.xlu0 %178
    %v180 = vsel %vm40, %v158, 0.0
    %181 = vadd.xlane.f32.xlu0 %v180
    %v182 = vpop.xlane.xlu0 %181
    %v183 = vsel %vm40, %v159, 0.0
    %184 = vadd.xlane.f32.xlu0 %v183
    %v185 = vpop.xlane.xlu0 %184
    %v186 = vsel %vm40, %v160, 0.0
    %187 = vadd.xlane.f32.xlu0 %v186
    %v188 = vpop.xlane.xlu0 %187
    %v189 = vsel %vm40, %v161, 0.0
    %190 = vadd.xlane.f32.xlu0 %v189
    %v191 = vpop.xlane.xlu0 %190
    %v192 = vsel %vm40, %v162, 0.0
    %193 = vadd.xlane.f32.xlu0 %v192
    %v194 = vpop.xlane.xlu0 %193
    %v195 = vsel %vm40, %v163, 0.0
    %196 = vadd.xlane.f32.xlu0 %v195
    %v197 = vpop.xlane.xlu0 %196
    %v198 = vsel %vm40, %v164, 0.0
    %199 = vadd.xlane.f32.xlu0 %v198
    %v200 = vpop.xlane.xlu0 %199
    %v201 = vsel %vm40, %v165, 0.0
    %202 = vadd.xlane.f32.xlu0 %v201
    %v203 = vpop.xlane.xlu0 %202
    %v204 = vsel %vm40, %v166, 0.0
    %205 = vadd.xlane.f32.xlu0 %v204
    %v206 = vpop.xlane.xlu0 %205
    %v207 = vsel %vm40, %v167, 0.0
    %208 = vadd.xlane.f32.xlu0 %v207
    %v209 = vpop.xlane.xlu0 %208
    %v210 = vsel %vm40, %v168, 0.0
    %211 = vadd.xlane.f32.xlu0 %v210
    %v212 = vpop.xlane.xlu0 %211
    %v213 = vsel %vm40, %v169, 0.0
    %214 = vadd.xlane.f32.xlu0 %v213
    %v215 = vpop.xlane.xlu0 %214
    %v216 = vsel %vm40, %v170, 0.0
    %217 = vadd.xlane.f32.xlu0 %v216
    %v218 = vpop.xlane.xlu0 %217
    %vm219 = vcmask 7168
    %220 = vst.msk [vmem:[%s6] sm:$0xff] %vm219, %v173
    %221 = vst.msk [vmem:[%s6 + $0x8] sm:$0xff] %vm219, %v176
    %222 = vst.msk [vmem:[%s6 + $0x10] sm:$0xff] %vm219, %v179
    %223 = vst.msk [vmem:[%s6 + $0x18] sm:$0xff] %vm219, %v182
    %224 = vst.msk [vmem:[%s6 + $0x20] sm:$0xff] %vm219, %v185
    %225 = vst.msk [vmem:[%s6 + $0x28] sm:$0xff] %vm219, %v188
    %226 = vst.msk [vmem:[%s6 + $0x30] sm:$0xff] %vm219, %v191
    %227 = vst.msk [vmem:[%s6 + $0x38] sm:$0xff] %vm219, %v194
    %228 = vst.msk [vmem:[%s6 + $0x40] sm:$0xff] %vm219, %v197
    %229 = vst.msk [vmem:[%s6 + $0x48] sm:$0xff] %vm219, %v200
    %230 = vst.msk [vmem:[%s6 + $0x50] sm:$0xff] %vm219, %v203
    %231 = vst.msk [vmem:[%s6 + $0x58] sm:$0xff] %vm219, %v206
    %232 = vst.msk [vmem:[%s6 + $0x60] sm:$0xff] %vm219, %v209
    %233 = vst.msk [vmem:[%s6 + $0x68] sm:$0xff] %vm219, %v212
    %234 = vst.msk [vmem:[%s6 + $0x70] sm:$0xff] %vm219, %v215
    %235 = vst.msk [vmem:[%s6 + $0x78] sm:$0xff] %vm219, %v218
    %v237 = vsel %vm40, %v37, 0
    %v240 = vsel %vm40, %v107, 0
    %v243 = vsel %vm40, %v110, 0
    %v246 = vsel %vm40, %v113, 0
    %v249 = vsel %vm40, %v116, 0
    %v252 = vsel %vm40, %v119, 0
    %v255 = vsel %vm40, %v122, 0
    %v258 = vsel %vm40, %v125, 0
    %v261 = vsel %vm40, %v128, 0
    %v264 = vsel %vm40, %v131, 0
    %v267 = vsel %vm40, %v134, 0
    %v270 = vsel %vm40, %v137, 0
    %v273 = vsel %vm40, %v140, 0
    %v276 = vsel %vm40, %v143, 0
    %v279 = vsel %vm40, %v146, 0
    %v282 = vsel %vm40, %v149, 0
    %v285 = vsel %vm40, %v152, 0
    %287 = vmatpush.xpose.msra.mxu0 %v285
    %288 = vmatpush.xpose.msra.mxu0 %v282
    %289 = vmatpush.xpose.msra.mxu0 %v279
    %290 = vmatpush.xpose.msra.mxu0 %v276
    %291 = vmatpush.xpose.msra.mxu0 %v273
    %292 = vmatpush.xpose.msra.mxu0 %v270
    %293 = vmatpush.xpose.msra.mxu0 %v267
    %294 = vmatpush.xpose.msra.mxu0 %v264
    %295 = vmatpush.xpose.msra.mxu0 %v261
    %296 = vmatpush.xpose.msra.mxu0 %v258
    %297 = vmatpush.xpose.msra.mxu0 %v255
    %298 = vmatpush.xpose.msra.mxu0 %v252
    %299 = vmatpush.xpose.msra.mxu0 %v249
    %300 = vmatpush.xpose.msra.mxu0 %v246
    %301 = vmatpush.xpose.msra.mxu0 %v243
    %302 = vmatpush.xpose.msra.mxu0 %v240
    %303 = vmatmul.f32.gmra.mxu0 %v237
    %v304 = vpop.f32.mrf.mxu0
    %v305 = vadd.f32 0.0, %v304
    %306 = vdwg.mxu0
    %307 = vst [vmem:[#allocation2] sm:$0x1] %v305
    %v308 = vpack.c.bf16 %v107, %v107
    %v309 = vpack.c.bf16 %v110, %v110
    %v310 = vpack.c.bf16 %v113, %v113
    %v311 = vpack.c.bf16 %v116, %v116
    %v312 = vpack.c.bf16 %v119, %v119
    %v313 = vpack.c.bf16 %v122, %v122
    %v314 = vpack.c.bf16 %v125, %v125
    %v315 = vpack.c.bf16 %v128, %v128
    %v316 = vpack.c.bf16 %v131, %v131
    %v317 = vpack.c.bf16 %v134, %v134
    %v318 = vpack.c.bf16 %v137, %v137
    %v319 = vpack.c.bf16 %v140, %v140
    %v320 = vpack.c.bf16 %v143, %v143
    %v321 = vpack.c.bf16 %v146, %v146
    %v322 = vpack.c.bf16 %v149, %v149
    %v323 = vpack.c.bf16 %v152, %v152
    %vm324 = vcmask 60416
    %325 = vst.msk [vmem:[%s4] sm:$0xf] %vm324, %v308
    %326 = vst.msk [vmem:[%s4 + $0x4] sm:$0xf] %vm324, %v309
    %327 = vst.msk [vmem:[%s4 + $0x8] sm:$0xf] %vm324, %v310
    %328 = vst.msk [vmem:[%s4 + $0xc] sm:$0xf] %vm324, %v311
    %329 = vst.msk [vmem:[%s4 + $0x10] sm:$0xf] %vm324, %v312
    %330 = vst.msk [vmem:[%s4 + $0x14] sm:$0xf] %vm324, %v313
    %331 = vst.msk [vmem:[%s4 + $0x18] sm:$0xf] %vm324, %v314
    %332 = vst.msk [vmem:[%s4 + $0x1c] sm:$0xf] %vm324, %v315
    %333 = vst.msk [vmem:[%s4 + $0x20] sm:$0xf] %vm324, %v316
    %334 = vst.msk [vmem:[%s4 + $0x24] sm:$0xf] %vm324, %v317
    %335 = vst.msk [vmem:[%s4 + $0x28] sm:$0xf] %vm324, %v318
    %336 = vst.msk [vmem:[%s4 + $0x2c] sm:$0xf] %vm324, %v319
    %337 = vst.msk [vmem:[%s4 + $0x30] sm:$0xf] %vm324, %v320
    %338 = vst.msk [vmem:[%s4 + $0x34] sm:$0xf] %vm324, %v321
    %339 = vst.msk [vmem:[%s4 + $0x38] sm:$0xf] %vm324, %v322
    %340 = vst.msk [vmem:[%s4 + $0x3c] sm:$0xf] %vm324, %v323
    %s341 = scalar_lea.vmem %s1, 8
    %v342 = vld [vmem:[%s341] sm:$0xff]
    %343 = vmatpush.msra.mxu0 0.0
    %344 = vmatpush.msra.mxu0 0.0
    %345 = vmatpush.msra.mxu0 0.0
    %346 = vmatpush.msra.mxu0 0.0
    %347 = vmatpush.msra.mxu0 0.0
    %348 = vmatpush.msra.mxu0 0.0
    %349 = vmatpush.msra.mxu0 0.0
    %350 = vmatpush.msra.mxu0 0.0
    %351 = vmatpush.msra.mxu0 0.0
    %352 = vmatpush.msra.mxu0 0.0
    %353 = vmatpush.msra.mxu0 0.0
    %354 = vmatpush.msra.mxu0 0.0
    %355 = vmatpush.msra.mxu0 0.0
    %356 = vmatpush.msra.mxu0 0.0
    %357 = vmatpush.msra.mxu0 0.0
    %358 = vmatpush.msra.mxu0 %v342
    %359 = vmatmul.f32.gmra.mxu0 %v42
    %v360 = vpop.f32.mrf.mxu0
    %v361 = vadd.f32 0.0, %v360
    %362 = vmatmul.f32.gmra.mxu0 %v45
    %v363 = vpop.f32.mrf.mxu0
    %v364 = vadd.f32 0.0, %v363
    %365 = vmatmul.f32.gmra.mxu0 %v48
    %v366 = vpop.f32.mrf.mxu0
    %v367 = vadd.f32 0.0, %v366
    %368 = vmatmul.f32.gmra.mxu0 %v51
    %v369 = vpop.f32.mrf.mxu0
    %v370 = vadd.f32 0.0, %v369
    %371 = vmatmul.f32.gmra.mxu0 %v54
    %v372 = vpop.f32.mrf.mxu0
    %v373 = vadd.f32 0.0, %v372
    %374 = vmatmul.f32.gmra.mxu0 %v57
    %v375 = vpop.f32.mrf.mxu0
    %v376 = vadd.f32 0.0, %v375
    %377 = vmatmul.f32.gmra.mxu0 %v60
    %v378 = vpop.f32.mrf.mxu0
    %v379 = vadd.f32 0.0, %v378
    %380 = vmatmul.f32.gmra.mxu0 %v63
    %v381 = vpop.f32.mrf.mxu0
    %v382 = vadd.f32 0.0, %v381
    %383 = vmatmul.f32.gmra.mxu0 %v66
    %v384 = vpop.f32.mrf.mxu0
    %v385 = vadd.f32 0.0, %v384
    %386 = vmatmul.f32.gmra.mxu0 %v69
    %v387 = vpop.f32.mrf.mxu0
    %v388 = vadd.f32 0.0, %v387
    %389 = vmatmul.f32.gmra.mxu0 %v72
    %v390 = vpop.f32.mrf.mxu0
    %v391 = vadd.f32 0.0, %v390
    %392 = vmatmul.f32.gmra.mxu0 %v75
    %v393 = vpop.f32.mrf.mxu0
    %v394 = vadd.f32 0.0, %v393
    %395 = vmatmul.f32.gmra.mxu0 %v78
    %v396 = vpop.f32.mrf.mxu0
    %v397 = vadd.f32 0.0, %v396
    %398 = vmatmul.f32.gmra.mxu0 %v81
    %v399 = vpop.f32.mrf.mxu0
    %v400 = vadd.f32 0.0, %v399
    %401 = vmatmul.f32.gmra.mxu0 %v84
    %v402 = vpop.f32.mrf.mxu0
    %v403 = vadd.f32 0.0, %v402
    %404 = vmatmul.f32.gmra.mxu0 %v87
    %v405 = vpop.f32.mrf.mxu0
    %v406 = vadd.f32 0.0, %v405
    %407 = vdwg.mxu0
    %v408 = vperm.slane %v38, 1
    %v409 = vmul.f32 %v361, %v408
    %v410 = vmul.f32 %v364, %v408
    %v411 = vmul.f32 %v367, %v408
    %v412 = vmul.f32 %v370, %v408
    %v413 = vmul.f32 %v373, %v408
    %v414 = vmul.f32 %v376, %v408
    %v415 = vmul.f32 %v379, %v408
    %v416 = vmul.f32 %v382, %v408
    %v417 = vmul.f32 %v385, %v408
    %v418 = vmul.f32 %v388, %v408
    %v419 = vmul.f32 %v391, %v408
    %v420 = vmul.f32 %v394, %v408
    %v421 = vmul.f32 %v397, %v408
    %v422 = vmul.f32 %v400, %v408
    %v423 = vmul.f32 %v403, %v408
    %v424 = vmul.f32 %v406, %v408
    %v425 = vsel %vm40, %v409, 0.0
    %426 = vadd.xlane.f32.xlu0 %v425
    %v427 = vpop.xlane.xlu0 %426
    %v428 = vsel %vm40, %v410, 0.0
    %429 = vadd.xlane.f32.xlu0 %v428
    %v430 = vpop.xlane.xlu0 %429
    %v431 = vsel %vm40, %v411, 0.0
    %432 = vadd.xlane.f32.xlu0 %v431
    %v433 = vpop.xlane.xlu0 %432
    %v434 = vsel %vm40, %v412, 0.0
    %435 = vadd.xlane.f32.xlu0 %v434
    %v436 = vpop.xlane.xlu0 %435
    %v437 = vsel %vm40, %v413, 0.0
    %438 = vadd.xlane.f32.xlu0 %v437
    %v439 = vpop.xlane.xlu0 %438
    %v440 = vsel %vm40, %v414, 0.0
    %441 = vadd.xlane.f32.xlu0 %v440
    %v442 = vpop.xlane.xlu0 %441
    %v443 = vsel %vm40, %v415, 0.0
    %444 = vadd.xlane.f32.xlu0 %v443
    %v445 = vpop.xlane.xlu0 %444
    %v446 = vsel %vm40, %v416, 0.0
    %447 = vadd.xlane.f32.xlu0 %v446
    %v448 = vpop.xlane.xlu0 %447
    %v449 = vsel %vm40, %v417, 0.0
    %450 = vadd.xlane.f32.xlu0 %v449
    %v451 = vpop.xlane.xlu0 %450
    %v452 = vsel %vm40, %v418, 0.0
    %453 = vadd.xlane.f32.xlu0 %v452
    %v454 = vpop.xlane.xlu0 %453
    %v455 = vsel %vm40, %v419, 0.0
    %456 = vadd.xlane.f32.xlu0 %v455
    %v457 = vpop.xlane.xlu0 %456
    %v458 = vsel %vm40, %v420, 0.0
    %459 = vadd.xlane.f32.xlu0 %v458
    %v460 = vpop.xlane.xlu0 %459
    %v461 = vsel %vm40, %v421, 0.0
    %462 = vadd.xlane.f32.xlu0 %v461
    %v463 = vpop.xlane.xlu0 %462
    %v464 = vsel %vm40, %v422, 0.0
    %465 = vadd.xlane.f32.xlu0 %v464
    %v466 = vpop.xlane.xlu0 %465
    %v467 = vsel %vm40, %v423, 0.0
    %468 = vadd.xlane.f32.xlu0 %v467
    %v469 = vpop.xlane.xlu0 %468
    %v470 = vsel %vm40, %v424, 0.0
    %471 = vadd.xlane.f32.xlu0 %v470
    %v472 = vpop.xlane.xlu0 %471
    %s473 = scalar_lea.vmem %s6, 128
    %474 = vst.msk [vmem:[%s473] sm:$0xff] %vm219, %v427
    %475 = vst.msk [vmem:[%s473 + $0x8] sm:$0xff] %vm219, %v430
    %476 = vst.msk [vmem:[%s473 + $0x10] sm:$0xff] %vm219, %v433
    %477 = vst.msk [vmem:[%s473 + $0x18] sm:$0xff] %vm219, %v436
    %478 = vst.msk [vmem:[%s473 + $0x20] sm:$0xff] %vm219, %v439
    %479 = vst.msk [vmem:[%s473 + $0x28] sm:$0xff] %vm219, %v442
    %480 = vst.msk [vmem:[%s473 + $0x30] sm:$0xff] %vm219, %v445
    %481 = vst.msk [vmem:[%s473 + $0x38] sm:$0xff] %vm219, %v448
    %482 = vst.msk [vmem:[%s473 + $0x40] sm:$0xff] %vm219, %v451
    %483 = vst.msk [vmem:[%s473 + $0x48] sm:$0xff] %vm219, %v454
    %484 = vst.msk [vmem:[%s473 + $0x50] sm:$0xff] %vm219, %v457
    %485 = vst.msk [vmem:[%s473 + $0x58] sm:$0xff] %vm219, %v460
    %486 = vst.msk [vmem:[%s473 + $0x60] sm:$0xff] %vm219, %v463
    %487 = vst.msk [vmem:[%s473 + $0x68] sm:$0xff] %vm219, %v466
    %488 = vst.msk [vmem:[%s473 + $0x70] sm:$0xff] %vm219, %v469
    %489 = vst.msk [vmem:[%s473 + $0x78] sm:$0xff] %vm219, %v472
    %v490 = vrot.slane %v37, 1
    %v491 = vsel %vm40, %v490, 0
    %v494 = vsel %vm40, %v361, 0
    %v497 = vsel %vm40, %v364, 0
    %v500 = vsel %vm40, %v367, 0
    %v503 = vsel %vm40, %v370, 0
    %v506 = vsel %vm40, %v373, 0
    %v509 = vsel %vm40, %v376, 0
    %v512 = vsel %vm40, %v379, 0
    %v515 = vsel %vm40, %v382, 0
    %v518 = vsel %vm40, %v385, 0
    %v521 = vsel %vm40, %v388, 0
    %v524 = vsel %vm40, %v391, 0
    %v527 = vsel %vm40, %v394, 0
    %v530 = vsel %vm40, %v397, 0
    %v533 = vsel %vm40, %v400, 0
    %v536 = vsel %vm40, %v403, 0
    %v539 = vsel %vm40, %v406, 0
    %541 = vmatpush.xpose.msra.mxu0 %v539
    %542 = vmatpush.xpose.msra.mxu0 %v536
    %543 = vmatpush.xpose.msra.mxu0 %v533
    %544 = vmatpush.xpose.msra.mxu0 %v530
    %545 = vmatpush.xpose.msra.mxu0 %v527
    %546 = vmatpush.xpose.msra.mxu0 %v524
    %547 = vmatpush.xpose.msra.mxu0 %v521
    %548 = vmatpush.xpose.msra.mxu0 %v518
    %549 = vmatpush.xpose.msra.mxu0 %v515
    %550 = vmatpush.xpose.msra.mxu0 %v512
    %551 = vmatpush.xpose.msra.mxu0 %v509
    %552 = vmatpush.xpose.msra.mxu0 %v506
    %553 = vmatpush.xpose.msra.mxu0 %v503
    %554 = vmatpush.xpose.msra.mxu0 %v500
    %555 = vmatpush.xpose.msra.mxu0 %v497
    %556 = vmatpush.xpose.msra.mxu0 %v494
    %557 = vmatmul.f32.gmra.mxu0 %v491
    %v558 = vpop.f32.mrf.mxu0
    %v559 = vadd.f32 0.0, %v558
    %560 = vdwg.mxu0
    %s561 = scalar_lea.vmem [#allocation2], 1
    %562 = vst [vmem:[%s561] sm:$0x1] %v559
    %v563 = vpack.c.bf16 %v361, %v361
    %v564 = vpack.c.bf16 %v364, %v364
    %v565 = vpack.c.bf16 %v367, %v367
    %v566 = vpack.c.bf16 %v370, %v370
    %v567 = vpack.c.bf16 %v373, %v373
    %v568 = vpack.c.bf16 %v376, %v376
    %v569 = vpack.c.bf16 %v379, %v379
    %v570 = vpack.c.bf16 %v382, %v382
    %v571 = vpack.c.bf16 %v385, %v385
    %v572 = vpack.c.bf16 %v388, %v388
    %v573 = vpack.c.bf16 %v391, %v391
    %v574 = vpack.c.bf16 %v394, %v394
    %v575 = vpack.c.bf16 %v397, %v397
    %v576 = vpack.c.bf16 %v400, %v400
    %v577 = vpack.c.bf16 %v403, %v403
    %v578 = vpack.c.bf16 %v406, %v406
    %s579 = scalar_lea.vmem %s4, 64
    %580 = vst.msk [vmem:[%s579] sm:$0xf] %vm324, %v563
    %581 = vst.msk [vmem:[%s579 + $0x4] sm:$0xf] %vm324, %v564
    %582 = vst.msk [vmem:[%s579 + $0x8] sm:$0xf] %vm324, %v565
    %583 = vst.msk [vmem:[%s579 + $0xc] sm:$0xf] %vm324, %v566
    %584 = vst.msk [vmem:[%s579 + $0x10] sm:$0xf] %vm324, %v567
    %585 = vst.msk [vmem:[%s579 + $0x14] sm:$0xf] %vm324, %v568
    %586 = vst.msk [vmem:[%s579 + $0x18] sm:$0xf] %vm324, %v569
    %587 = vst.msk [vmem:[%s579 + $0x1c] sm:$0xf] %vm324, %v570
    %588 = vst.msk [vmem:[%s579 + $0x20] sm:$0xf] %vm324, %v571
    %589 = vst.msk [vmem:[%s579 + $0x24] sm:$0xf] %vm324, %v572
    %590 = vst.msk [vmem:[%s579 + $0x28] sm:$0xf] %vm324, %v573
    %591 = vst.msk [vmem:[%s579 + $0x2c] sm:$0xf] %vm324, %v574
    %592 = vst.msk [vmem:[%s579 + $0x30] sm:$0xf] %vm324, %v575
    %593 = vst.msk [vmem:[%s579 + $0x34] sm:$0xf] %vm324, %v576
    %594 = vst.msk [vmem:[%s579 + $0x38] sm:$0xf] %vm324, %v577
    %595 = vst.msk [vmem:[%s579 + $0x3c] sm:$0xf] %vm324, %v578
    // Predicated region
    $region18: #{tpu_custom_call.1} parent=1 // pred_check
      _
    $region19: #{tpu_custom_call.1} parent=1 // pred_check_branch
      %597 = sbr.rel (0) target = $region21
    $region20: #{tpu_custom_call.1} parent=1 // pred_region
      _
    $region21: #{tpu_custom_call.1} parent=1 // pred_fallthru
      _
    // Predicated region
    $region22: #{tpu_custom_call.1} parent=1 // pred_check
      _
    $region23: #{tpu_custom_call.1} parent=1 // pred_check_branch
      %599 = sbr.rel (0) target = $region25
    $region24: #{tpu_custom_call.1} parent=1 // pred_region
      %601 = vsyncadd [#allocation3], 0
      %s602 = sshll.u32 [#allocation2], 4
      %s603 = int_to_ptr.vmem [resolvable:$true] %s602
      %s604 = sshll.u32 %s5, 4
      %s605 = int_to_ptr.hbm [resolvable:$true] %s604
      %610 = dma.vmem_to_hbm [thread:$0]  %s603, 32, %s605, [#allocation3], 16, 16, 1
    $region25: #{tpu_custom_call.1} parent=1 // pred_fallthru
      _
    // Predicated region
    $region26: #{tpu_custom_call.1} parent=1 // pred_check
      _
    $region27: #{tpu_custom_call.1} parent=1 // pred_check_branch
      %612 = sbr.rel (0) target = $region29
    $region28: #{tpu_custom_call.1} parent=1 // pred_region
      _
    $region29: #{tpu_custom_call.1} parent=1 // pred_fallthru
      _
    // Predicated region
    $region30: #{tpu_custom_call.1} parent=1 // pred_check
      _
    $region31: #{tpu_custom_call.1} parent=1 // pred_check_branch
      %614 = sbr.rel (0) target = $region33
    $region32: #{tpu_custom_call.1} parent=1 // pred_region
      _
    $region33: #{tpu_custom_call.1} parent=1 // pred_fallthru
      _
    // Predicated region
    $region34: #{tpu_custom_call.1} parent=1 // pred_check
      _
    $region35: #{tpu_custom_call.1} parent=1 // pred_check_branch
      %616 = sbr.rel (0) target = $region37
    $region36: #{tpu_custom_call.1} parent=1 // pred_region
      %618 = dma.done [#allocation3], 32
    $region37: #{tpu_custom_call.1} parent=1 // pred_fallthru
      _
    // Predicated region
    $region38: #{tpu_custom_call.1} parent=1 // pred_check
      _
    $region39: #{tpu_custom_call.1} parent=1 // pred_check_branch
      %620 = sbr.rel (0) target = $region41
    $region40: #{tpu_custom_call.1} parent=1 // pred_region
      _
    $region41: #{tpu_custom_call.1} parent=1 // pred_fallthru
      _
    %621 = vsyncpa [#allocation3], 1

</llo_original>
